<compile_context>
chip_gen: v5e
topology: v5e:2x2
jax: 0.10.0
libtpu: 0.0.40
codegen_flags: <defaults>
</compile_context>

<pallas_src>
import functools

import jax
import jax.numpy as jnp
from jax import lax
from jax.experimental import pallas as pl
from jax.experimental.pallas import tpu as pltpu

GAMMA = 1.5   # implemented exactly as z * sqrt(z)
ALPHA = 0.25

_LANES = 128
_SUBLANE = 16          # row granularity covering both f32 (8) and bf16 (16) tiling
_MAX_TILE_ROWS = 8192  # 4 MiB (f32) per input per buffer -> fits v7x 64 MiB VMEM


def _cdiv(a, b):
    return -(-a // b)


def _round_up(a, b):
    return _cdiv(a, b) * b


def _focal_loss_kernel(pred_ref, true_ref, out_ref, *,
                       chunk_rows, nchunks, limit, needs_mask, num_blocks):
    """Per grid block: streamed focal-loss partial sum folded to one (8,128) tile."""

    def chunk_partial(j, base_idx):
        r0 = j * chunk_rows
        if not isinstance(r0, int):
            r0 = pl.multiple_of(r0, chunk_rows)
        x = pred_ref[pl.ds(r0, chunk_rows), :].astype(jnp.float32)
        t = true_ref[pl.ds(r0, chunk_rows), :].astype(jnp.float32)

        # One exp per element, reused for the stable BCE term and the sigmoid.
        e = jnp.exp(-jnp.abs(x))
        # BCEWithLogitsLoss(reduction='none'):  max(x,0) - x*t + log1p(exp(-|x|))
        bce = jnp.maximum(x, 0.0) - x * t + jnp.log1p(e)
        # sigmoid(x):  x>=0 -> 1/(1+e) ;  x<0 -> e/(1+e)   (EUP reciprocal)
        inv = pl.reciprocal(1.0 + e, approx=True)
        p = jnp.where(x >= 0.0, inv, e * inv)

        p_t = t * p + (1.0 - t) * (1.0 - p)
        alpha_factor = t * ALPHA + (1.0 - t) * (1.0 - ALPHA)
        z = jnp.maximum(1.0 - p_t, 0.0)              # clamp guards approx-recip z<0
        loss = bce * alpha_factor * (z * jnp.sqrt(z))  # z ** 1.5

        if base_idx is not None:                     # last-block tail masking only
            idx = base_idx + j * (chunk_rows * _LANES)
            loss = jnp.where(idx < limit, loss, 0.0)

        # VPU-only fold (chunk_rows,128) -> (8,128); no XLU reduce, no scalar loop.
        return loss.reshape(chunk_rows // 8, 8, _LANES).sum(axis=0)

    def block_partial(masked):
        base_idx = None
        if masked:
            rr = lax.broadcasted_iota(jnp.int32, (chunk_rows, _LANES), 0)
            cc = lax.broadcasted_iota(jnp.int32, (chunk_rows, _LANES), 1)
            base_idx = rr * _LANES + cc   # block-local flat index: no i32 overflow
        if nchunks == 1:
            return chunk_partial(0, base_idx)
        return lax.fori_loop(
            0, nchunks,
            lambda j, acc: acc + chunk_partial(j, base_idx),
            jnp.zeros((8, _LANES), jnp.float32))

    if not needs_mask:
        out_ref[...] = block_partial(False)
    elif num_blocks == 1:
        out_ref[...] = block_partial(True)
    else:
        i = pl.program_id(0)
        last = pl.num_programs(0) - 1

        @pl.when(i != last)                 # hot blocks: zero masking overhead
        def _():
            out_ref[...] = block_partial(False)

        @pl.when(i == last)                 # only the last block pays for the mask
        def _():
            out_ref[...] = block_partial(True)


def focal_loss(pred, true, *, tile_rows=_MAX_TILE_ROWS, cast_true_to_bf16=True):
    """Focal loss, mean reduction, gamma=1.5, alpha=0.25 over logits/targets."""
    assert pred.shape == true.shape
    total = int(pred.size)

    if cast_true_to_bf16:
        # Exact for {0,1} targets; halves the target HBM stream for a mem-bound kernel.
        true = true.astype(jnp.bfloat16)

    pred_flat = pred.reshape(-1)
    true_flat = true.reshape(-1)

    rows = _cdiv(total, _LANES)
    if total % _LANES == 0 and rows >= _SUBLANE:
        # Zero-copy path: free reshape; ragged last grid block masked in-kernel.
        rows2d = rows
        pred2d = pred_flat.reshape(rows2d, _LANES)
        true2d = true_flat.reshape(rows2d, _LANES)
    else:
        # TODO(synk): for large totals not divisible by 128 this still pads (one
        # copy of each input); a fully zero-copy version needs a manual-DMA tail.
        rows2d = _round_up(max(rows, _SUBLANE), _SUBLANE)
        pad = rows2d * _LANES - total
        pred2d = jnp.pad(pred_flat, (0, pad)).reshape(rows2d, _LANES)
        true2d = jnp.pad(true_flat, (0, pad)).reshape(rows2d, _LANES)

    # Row tile: multiple of 16 (f32 & bf16 tiling), VMEM-capped, at least 2 grid
    # blocks when possible (v7x dual-TC sharding), then balanced across blocks.
    cap = max(_SUBLANE, (min(int(tile_rows), _MAX_TILE_ROWS) // _SUBLANE) * _SUBLANE)
    tr = min(cap, (rows2d // _SUBLANE) * _SUBLANE)
    if rows2d >= 2 * _SUBLANE:
        tr = min(tr, max(_SUBLANE, (rows2d // (2 * _SUBLANE)) * _SUBLANE))
    num_blocks = _cdiv(rows2d, tr)
    tr = min(tr, _round_up(_cdiv(rows2d, num_blocks), _SUBLANE))
    num_blocks = _cdiv(rows2d, tr)

    needs_mask = num_blocks * tr * _LANES != total
    limit = total - (num_blocks - 1) * tr * _LANES     # valid elems in last block
    chunk_rows = next(c for c in (128, 64, 32, 16) if tr % c == 0)
    nchunks = tr // chunk_rows

    kernel = functools.partial(
        _focal_loss_kernel, chunk_rows=chunk_rows, nchunks=nchunks,
        limit=limit, needs_mask=needs_mask, num_blocks=num_blocks)

    # VMEM budget: double-buffered I/O + chunk-sized temporaries + headroom.
    in_bytes = tr * _LANES * (pred2d.dtype.itemsize + true2d.dtype.itemsize)
    budget = (2 * in_bytes + 2 * 8 * _LANES * 4
              + 10 * chunk_rows * _LANES * 4 + (2 << 20))
    vmem_limit = int(min(max(budget, 16 << 20), 48 << 20))

    partials = pl.pallas_call(
        kernel,
        out_shape=jax.ShapeDtypeStruct((num_blocks * 8, _LANES), jnp.float32),
        grid_spec=pltpu.PrefetchScalarGridSpec(
            num_scalar_prefetch=0,
            grid=(num_blocks,),
            in_specs=[
                pl.BlockSpec((tr, _LANES), lambda i: (i, 0)),
                pl.BlockSpec((tr, _LANES), lambda i: (i, 0)),
            ],
            out_specs=pl.BlockSpec((8, _LANES), lambda i: (i, 0)),
        ),
        compiler_params=pltpu.CompilerParams(
            dimension_semantics=("parallel",),
            vmem_limit_bytes=vmem_limit),
    )(pred2d, true2d)

    # Tiny final reduce + mean outside the kernel.
    return jnp.sum(partials) / jnp.float32(total)


def focal_loss_ref(pred, true):
    x = pred.astype(jnp.float32)
    t = true.astype(jnp.float32)
    bce = jnp.maximum(x, 0.0) - x * t + jnp.log1p(jnp.exp(-jnp.abs(x)))
    p = jax.nn.sigmoid(x)
    p_t = t * p + (1.0 - t) * (1.0 - p)
    alpha_factor = t * ALPHA + (1.0 - t) * (1.0 - ALPHA)
    loss = bce * alpha_factor * (1.0 - p_t) ** GAMMA
    return jnp.mean(loss)


if __name__ == "__main__":
    key = jax.random.PRNGKey(0)
    k1, k2, k3, k4 = jax.random.split(key, 4)

    # Tolerances account for the approx (EUP) reciprocal used for sigmoid
    # (~2^-12 per-element relative error; far smaller after the mean).
    RTOL, ATOL = 5e-3, 1e-5

    # Small NCHW: batch=2, channels=4, spatial=16x16 (zero-copy, single block).
    pred = jax.random.normal(k1, (2, 4, 16, 16), dtype=jnp.float32) * 2.0
    true = (jax.random.uniform(k2, (2, 4, 16, 16)) > 0.7).astype(jnp.float32)
    out = focal_loss(pred, true)
    jax.block_until_ready(out)
    ref = focal_loss_ref(pred, true)
    assert jnp.allclose(out, ref, rtol=RTOL, atol=ATOL), (out, ref)

    # Multi-block grid + masked partial last block + in-kernel chunk loop.
    p2 = jax.random.normal(k3, (2, 3, 80, 80), dtype=jnp.float32)
    t2 = (jax.random.uniform(k4, (2, 3, 80, 80)) > 0.5).astype(jnp.float32)
    out2 = focal_loss(p2, t2)
    jax.block_until_ready(out2)
    assert jnp.allclose(out2, focal_loss_ref(p2, t2), rtol=RTOL, atol=ATOL)

    # Lane-ragged (numel % 128 != 0) padded / masked fallback path.
    p3 = jax.random.normal(k1, (3, 5, 7, 11), dtype=jnp.float32)
    t3 = (jax.random.uniform(k2, (3, 5, 7, 11)) > 0.5).astype(jnp.float32)
    out3 = focal_loss(p3, t3)
    jax.block_until_ready(out3)
    assert jnp.allclose(out3, focal_loss_ref(p3, t3), rtol=RTOL, atol=ATOL)

    print("KERNEL_OK")
</pallas_src>

<mosaic_0001>
module attributes {stable_mosaic.version = 11 : i64} {
  func.func @_focal_loss_kernel(%arg0: i32, %arg1: memref<16x128xf32, #tpu.memory_space<vmem>>, %arg2: memref<16x128xbf16, #tpu.memory_space<vmem>>, %arg3: memref<8x128xf32, #tpu.memory_space<vmem>>) attributes {dimension_semantics = [#tpu.dimension_semantics<parallel>], iteration_bounds = array<i64: 1>, scalar_prefetch = 0 : i64, scratch_operands = 0 : i64, tpu.core_type = #tpu.core_type<tc>, window_params = [{transform_indices = @transform_0, window_bounds = array<i64: 16, 128>}, {transform_indices = @transform_1, window_bounds = array<i64: 16, 128>}, {transform_indices = @transform_2, window_bounds = array<i64: 8, 128>}]} {
    %c0 = arith.constant 0 : index
    %c0_0 = arith.constant 0 : index
    %0 = vector.load %arg1[%c0, %c0_0] : memref<16x128xf32, #tpu.memory_space<vmem>>, vector<16x128xf32>
    %c0_1 = arith.constant 0 : index
    %c0_2 = arith.constant 0 : index
    %1 = vector.load %arg2[%c0_1, %c0_2] : memref<16x128xbf16, #tpu.memory_space<vmem>>, vector<16x128xbf16>
    %2 = arith.extf %1 : vector<16x128xbf16> to vector<16x128xf32>
    %3 = math.absf %0 : vector<16x128xf32>
    %cst = arith.constant 0.000000e+00 : f32
    %4 = vector.broadcast %cst : f32 to vector<16x128xf32>
    %5 = arith.subf %4, %3 : vector<16x128xf32>
    %6 = math.exp %5 : vector<16x128xf32>
    %cst_3 = arith.constant 0.000000e+00 : f32
    %7 = vector.broadcast %cst_3 : f32 to vector<16x128xf32>
    %8 = arith.maximumf %0, %7 : vector<16x128xf32>
    %9 = arith.mulf %0, %2 : vector<16x128xf32>
    %10 = arith.subf %8, %9 : vector<16x128xf32>
    %11 = math.log1p %6 : vector<16x128xf32>
    %12 = arith.addf %10, %11 : vector<16x128xf32>
    %cst_4 = arith.constant 1.000000e+00 : f32
    %13 = vector.broadcast %cst_4 : f32 to vector<16x128xf32>
    %14 = arith.addf %13, %6 : vector<16x128xf32>
    %15 = tpu.reciprocal %14 {approx = true} : vector<16x128xf32> -> vector<16x128xf32>
    %cst_5 = arith.constant 0.000000e+00 : f32
    %16 = vector.broadcast %cst_5 : f32 to vector<16x128xf32>
    %17 = arith.cmpf oge, %0, %16 : vector<16x128xf32>
    %18 = arith.mulf %6, %15 : vector<16x128xf32>
    %19 = arith.select %17, %15, %18 : vector<16x128xi1>, vector<16x128xf32>
    %20 = arith.mulf %2, %19 : vector<16x128xf32>
    %cst_6 = arith.constant 1.000000e+00 : f32
    %21 = vector.broadcast %cst_6 : f32 to vector<16x128xf32>
    %22 = arith.subf %21, %2 : vector<16x128xf32>
    %cst_7 = arith.constant 1.000000e+00 : f32
    %23 = vector.broadcast %cst_7 : f32 to vector<16x128xf32>
    %24 = arith.subf %23, %19 : vector<16x128xf32>
    %25 = arith.mulf %22, %24 : vector<16x128xf32>
    %26 = arith.addf %20, %25 : vector<16x128xf32>
    %cst_8 = arith.constant 2.500000e-01 : f32
    %27 = vector.broadcast %cst_8 : f32 to vector<16x128xf32>
    %28 = arith.mulf %2, %27 : vector<16x128xf32>
    %cst_9 = arith.constant 1.000000e+00 : f32
    %29 = vector.broadcast %cst_9 : f32 to vector<16x128xf32>
    %30 = arith.subf %29, %2 : vector<16x128xf32>
    %cst_10 = arith.constant 7.500000e-01 : f32
    %31 = vector.broadcast %cst_10 : f32 to vector<16x128xf32>
    %32 = arith.mulf %30, %31 : vector<16x128xf32>
    %33 = arith.addf %28, %32 : vector<16x128xf32>
    %cst_11 = arith.constant 1.000000e+00 : f32
    %34 = vector.broadcast %cst_11 : f32 to vector<16x128xf32>
    %35 = arith.subf %34, %26 : vector<16x128xf32>
    %cst_12 = arith.constant 0.000000e+00 : f32
    %36 = vector.broadcast %cst_12 : f32 to vector<16x128xf32>
    %37 = arith.maximumf %35, %36 : vector<16x128xf32>
    %38 = arith.mulf %12, %33 : vector<16x128xf32>
    %39 = math.sqrt %37 : vector<16x128xf32>
    %40 = arith.mulf %37, %39 : vector<16x128xf32>
    %41 = arith.mulf %38, %40 : vector<16x128xf32>
    %42 = vector.shape_cast %41 : vector<16x128xf32> to vector<2x8x128xf32>
    %cst_13 = arith.constant dense<0.000000e+00> : vector<8x128xf32>
    %43 = vector.multi_reduction <add>, %42, %cst_13 [0] : vector<2x8x128xf32> to vector<8x128xf32>
    %c0_14 = arith.constant 0 : index
    %c0_15 = arith.constant 0 : index
    %44 = vector.load %arg3[%c0_14, %c0_15] : memref<8x128xf32, #tpu.memory_space<vmem>>, vector<8x128xf32>
    tpu.vector_store %arg3[%c0_14, %c0_15], %43 {strides = array<i32>} : memref<8x128xf32, #tpu.memory_space<vmem>>, vector<8x128xf32>,
    return
  }
  func.func @transform_0(%arg0: i32) -> (i32, i32) {
    %c0_i32 = arith.constant 0 : i32
    %c0_i32_0 = arith.constant 0 : i32
    return %arg0, %c0_i32 : i32, i32
  }
  func.func @transform_1(%arg0: i32) -> (i32, i32) {
    %c0_i32 = arith.constant 0 : i32
    %c0_i32_0 = arith.constant 0 : i32
    return %arg0, %c0_i32 : i32, i32
  }
  func.func @transform_2(%arg0: i32) -> (i32, i32) {
    %c0_i32 = arith.constant 0 : i32
    %c0_i32_0 = arith.constant 0 : i32
    return %arg0, %c0_i32 : i32, i32
  }
}

</mosaic_0001>

<llo_original>
// kernel: tpu_custom_call.1
$region0: #{tpu_custom_call.1}
  #allocation0 [shape = 'u32[]', space=smem, size = 0x4, offset = 0x4, fixed_abs, tag = 'smem constant byte address 0x4 - core index']
  #allocation1 [shape = 'u32[72,128]{1,0:T(1,128)}', space=vmem, size = 0x9000, scoped, tag = 'internal scratch']
  %s0 = inlined_call_operand.hbm [shape: f32[16,128], index: 0, kind: input, shape index: {}]
  %s1 = inlined_call_operand.hbm [shape: bf16[16,128], index: 1, kind: input, shape index: {}]
  %s2 = inlined_call_operand.hbm [shape: f32[8,128], index: 2, kind: output, shape index: {}]
  %s3 = sld [smem:[#allocation0]]
  $region26: #{tpu_custom_call.1} parent=0
    _
  %s5 = ssub.s32 1, %s3
  %s6 = scalar_select 0, %s5, %s3
  $region1: #{tpu_custom_call.1} parent=0
    #allocation2 [shape = 'u8[8192]{0}', space=vmem, size = 0x2000, scoped, tag = 'input window, operand 0, single buffered']
    #allocation3 [shape = 's32[1]{0}', space=sflag, size = 0x4, scoped, tag = 'scoped memory for tpu_custom_call.1']
    #allocation4 [shape = 's32[1]{0}', space=sflag, size = 0x4, scoped, tag = 'scoped memory for tpu_custom_call.1']
    #allocation5 [shape = 'u8[4096]{0}', space=vmem, size = 0x1000, scoped, tag = 'input window, operand 1, single buffered']
    #allocation6 [shape = 's32[1]{0}', space=sflag, size = 0x4, scoped, tag = 'scoped memory for tpu_custom_call.1']
    #allocation7 [shape = 'u8[4096]{0}', space=vmem, size = 0x1000, scoped, tag = 'output window, operand 0, single buffered']
    %7 = vsyncpa [#allocation3], 0
    %8 = vsyncpa [#allocation6], 0
    %9 = vsyncpa [#allocation4], 0
    // Predicated region
    $region2: #{tpu_custom_call.1} parent=1 // pred_check
      _
    $region3: #{tpu_custom_call.1} parent=1 // pred_check_branch
      %11 = sbr.rel (0) target = $region5
    $region4: #{tpu_custom_call.1} parent=1 // pred_region
      %13 = vsyncadd [#allocation3], 0
      %s14 = sshll.u32 %s0, 4
      %s15 = int_to_ptr.hbm [resolvable:$true] %s14
      %s16 = sshll.u32 [#allocation2], 4
      %s17 = int_to_ptr.vmem [resolvable:$true] %s16
      %22 = dma.hbm_to_vmem [thread:$0]  %s15, 256, %s17, [#allocation3], 128, 128, 8
    $region5: #{tpu_custom_call.1} parent=1 // pred_fallthru
      _
    // Predicated region
    $region6: #{tpu_custom_call.1} parent=1 // pred_check
      _
    $region7: #{tpu_custom_call.1} parent=1 // pred_check_branch
      %24 = sbr.rel (0) target = $region9
    $region8: #{tpu_custom_call.1} parent=1 // pred_region
      %26 = vsyncadd [#allocation6], 0
      %s27 = sshll.u32 %s1, 4
      %s28 = int_to_ptr.hbm [resolvable:$true] %s27
      %s29 = sshll.u32 [#allocation5], 4
      %s30 = int_to_ptr.vmem [resolvable:$true] %s29
      %35 = dma.hbm_to_vmem [thread:$0]  %s28, 128, %s30, [#allocation6], 64, 64, 4
    $region9: #{tpu_custom_call.1} parent=1 // pred_fallthru
      _
    // Predicated region
    $region10: #{tpu_custom_call.1} parent=1 // pred_check
      _
    $region11: #{tpu_custom_call.1} parent=1 // pred_check_branch
      %37 = sbr.rel (0) target = $region13
    $region12: #{tpu_custom_call.1} parent=1 // pred_region
      %39 = dma.done [#allocation3], 256
    $region13: #{tpu_custom_call.1} parent=1 // pred_fallthru
      _
    // Predicated region
    $region14: #{tpu_custom_call.1} parent=1 // pred_check
      _
    $region15: #{tpu_custom_call.1} parent=1 // pred_check_branch
      %41 = sbr.rel (0) target = $region17
    $region16: #{tpu_custom_call.1} parent=1 // pred_region
      %43 = dma.done [#allocation6], 128
    $region17: #{tpu_custom_call.1} parent=1 // pred_fallthru
      _
    %v44 = vld [vmem:[#allocation2] sm:$0xff]
    %v45 = vld [vmem:[#allocation2 + $0x8] sm:$0xff]
    %v46 = vld [vmem:[#allocation5] sm:$0xf]
    %v47 = vld [vmem:[#allocation5 + $0x4] sm:$0xf]
    %v48 = vunpack.c.l.bf16 %v46
    %v49 = vunpack.c.l.bf16 %v47
    %v50 = vand.u32 2147483647, %v44
    %v51 = vand.u32 2147483647, %v45
    %v52 = vsub.f32 0.0, %v50
    %v53 = vsub.f32 0.0, %v51
    %v54 = vmul.f32 %v52, 1.442695
    %v55 = vpow.pop %v54
    %v56 = vmul.f32 %v53, 1.442695
    %v57 = vpow.pop %v56
    %v58 = vmax.f32 %v44, 0.0
    %v59 = vmax.f32 %v45, 0.0
    %v60 = vmul.f32 %v44, %v48
    %v61 = vmul.f32 %v45, %v49
    %v62 = vsub.f32 %v58, %v60
    %v63 = vsub.f32 %v59, %v61
    %v64 = vadd.f32 %v55, 1.0
    %v65 = vlog2.pop %v64
    %v66 = vmul.f32 %v65, 0.6931472
    %v67 = vmul.f32 -0.5, %v55
    %v68 = vadd.f32 %v67, 1.0
    %v69 = vmul.f32 %v68, %v55
    %v70 = vand.u32 2147483647, %v55
    %vm71 = vcmp.lt.f32.partialorder %v70, 0.0004427343
    %v72 = vsel %vm71, %v69, %v66
    %v73 = vadd.f32 %v57, 1.0
    %v74 = vlog2.pop %v73
    %v75 = vmul.f32 %v74, 0.6931472
    %v76 = vmul.f32 -0.5, %v57
    %v77 = vadd.f32 %v76, 1.0
    %v78 = vmul.f32 %v77, %v57
    %v79 = vand.u32 2147483647, %v57
    %vm80 = vcmp.lt.f32.partialorder %v79, 0.0004427343
    %v81 = vsel %vm80, %v78, %v75
    %v82 = vadd.f32 %v62, %v72
    %v83 = vadd.f32 %v63, %v81
    %v84 = vadd.f32 %v55, 1.0
    %v85 = vadd.f32 %v57, 1.0
    %v86 = vrcp.pop %v84
    %v87 = vrcp.pop %v85
    %vm88 = vcmp.ge.f32.partialorder %v44, 0.0
    %vm89 = vcmp.ge.f32.partialorder %v45, 0.0
    %v90 = vmul.f32 %v55, %v86
    %v91 = vmul.f32 %v57, %v87
    %v92 = vsel %vm88, %v86, %v90
    %v93 = vsel %vm89, %v87, %v91
    %v94 = vmul.f32 %v48, %v92
    %v95 = vmul.f32 %v49, %v93
    %v96 = vsub.f32 1.0, %v48
    %v97 = vsub.f32 1.0, %v49
    %v98 = vsub.f32 1.0, %v92
    %v99 = vsub.f32 1.0, %v93
    %v100 = vmul.f32 %v96, %v98
    %v101 = vmul.f32 %v97, %v99
    %v102 = vadd.f32 %v94, %v100
    %v103 = vadd.f32 %v95, %v101
    %v104 = vmul.f32 %v48, 0.25
    %v105 = vmul.f32 %v49, 0.25
    %v106 = vmul.f32 %v96, 0.75
    %v107 = vmul.f32 %v97, 0.75
    %v108 = vadd.f32 %v104, %v106
    %v109 = vadd.f32 %v105, %v107
    %v110 = vsub.f32 1.0, %v102
    %v111 = vsub.f32 1.0, %v103
    %v112 = vmax.f32 %v110, 0.0
    %v113 = vmax.f32 %v111, 0.0
    %v114 = vmul.f32 %v82, %v108
    %v115 = vmul.f32 %v83, %v109
    %v116 = vrsqrt.pop %v112
    %v117 = vmul.f32 %v116, %v112
    %v118 = vmul.f32 %v117, %v116
    %v119 = vmul.f32 0.5, %v118
    %v120 = vsub.f32 1.5, %v119
    %v121 = vmul.f32 %v116, %v120
    %v122 = vmul.f32 %v112, %v121
    %vm123 = vcmp.eq.f32.partialorder %v112, inf
    %v124 = vsel %vm123, %v112, %v122
    %vm125 = vcmp.eq.f32.partialorder %v112, 0.0
    %v126 = vand.u32 %v112, 2147483648
    %v127 = vsel %vm125, %v126, %v124
    %v128 = vrsqrt.pop %v113
    %v129 = vmul.f32 %v128, %v113
    %v130 = vmul.f32 %v129, %v128
    %v131 = vmul.f32 0.5, %v130
    %v132 = vsub.f32 1.5, %v131
    %v133 = vmul.f32 %v128, %v132
    %v134 = vmul.f32 %v113, %v133
    %vm135 = vcmp.eq.f32.partialorder %v113, inf
    %v136 = vsel %vm135, %v113, %v134
    %vm137 = vcmp.eq.f32.partialorder %v113, 0.0
    %v138 = vand.u32 %v113, 2147483648
    %v139 = vsel %vm137, %v138, %v136
    %v140 = vmul.f32 %v112, %v127
    %v141 = vmul.f32 %v113, %v139
    %v142 = vmul.f32 %v114, %v140
    %v143 = vmul.f32 %v115, %v141
    %v144 = vadd.f32 %v142, %v143
    %145 = vst [vmem:[#allocation7] sm:$0xff] %v144
    // Predicated region
    $region18: #{tpu_custom_call.1} parent=1 // pred_check
      _
    $region19: #{tpu_custom_call.1} parent=1 // pred_check_branch
      %147 = sbr.rel (0) target = $region21
    $region20: #{tpu_custom_call.1} parent=1 // pred_region
      %149 = vsyncadd [#allocation4], 0
      %s151 = sshll.u32 [#allocation7], 4
      %s152 = int_to_ptr.vmem [resolvable:$true] %s151
      %s153 = sshll.u32 %s2, 4
      %s154 = int_to_ptr.hbm [resolvable:$true] %s153
      %156 = dma.vmem_to_hbm [thread:$0]  %s152, 128, %s154, [#allocation4]
    $region21: #{tpu_custom_call.1} parent=1 // pred_fallthru
      _
    // Predicated region
    $region22: #{tpu_custom_call.1} parent=1 // pred_check
      _
    $region23: #{tpu_custom_call.1} parent=1 // pred_check_branch
      %158 = sbr.rel (0) target = $region25
    $region24: #{tpu_custom_call.1} parent=1 // pred_region
      %160 = dma.done [#allocation4], 128
    $region25: #{tpu_custom_call.1} parent=1 // pred_fallthru
      _
    %161 = vsyncpa [#allocation3], 1
    %162 = vsyncpa [#allocation6], 1
    %163 = vsyncpa [#allocation4], 1

</llo_original>
